<compile_context>
chip_gen: v5e
topology: v5e:2x2
jax: 0.10.0
libtpu: 0.0.40
codegen_flags: <defaults>
</compile_context>

<pallas_src>
import functools

import jax
import jax.numpy as jnp
from jax import lax
from jax.experimental import pallas as pl
from jax.experimental.pallas import tpu as pltpu


_EPS = 1e-12      # matches F.normalize(p=2, eps=1e-12)
_NEG = -1e30      # finite "-inf" for masked (padded) classes / running-max init


def _round_up(x, m):
    return (x + m - 1) // m * m


def _auto_block_b(B):
    if B <= 256:
        return _round_up(B, 8)        # tiny batch: no point padding to MXU width
    if B <= 1024:
        return _round_up(B, 256)      # one tile; M a multiple of 256 (v6e/v7x MXU)
    return 512                        # several tiles; nb >= 2 feeds both v7x TCs


def _auto_block_c(C):
    return min(_round_up(C, 256), 1024)


def _mosaic_params(dimension_semantics):
    kwargs = dict(dimension_semantics=dimension_semantics)
    try:
        # Per-generation VMEM limit (~48 MiB on v7x, ~96 MiB on v5e/v6e).
        vmem = pltpu.get_tpu_info().vmem_capacity_bytes
        kwargs["vmem_limit_bytes"] = int(vmem) * 3 // 4
    except Exception:
        pass                          # no TPU / old API -> leave compiler default
    return pltpu.CompilerParams(**kwargs)


# ---------------------------------------------------------------------------
# Kernel 1 (two-pass path only): L2-normalize class-weight rows, zero the
# ragged class tail, emit the tile *transposed* as (D_pad, block_c) bf16.
# ---------------------------------------------------------------------------
def _normalize_transpose_kernel(w_ref, out_ref, *, num_classes):
    i = pl.program_id(0)
    tc = w_ref.shape[0]
    w = w_ref[...].astype(jnp.float32)
    row = lax.broadcasted_iota(jnp.int32, w.shape, 0) + i * tc
    w = jnp.where(row < num_classes, w, 0.0)              # ragged tail -> zeros
    sumsq = jnp.sum(w * w, axis=1, keepdims=True)
    inv = lax.rsqrt(jnp.maximum(sumsq, jnp.float32(_EPS * _EPS)))   # EUP rsqrt
    # Transpose once here (memory-bound kernel, XLU idle) so the hot kernel
    # does an NN matmul with no per-step weight-tile transpose.
    out_ref[...] = jnp.transpose((w * inv).astype(jnp.bfloat16))


# ---------------------------------------------------------------------------
# Main kernel: grid = (batch tiles [parallel], class tiles [arbitrary]).
# Online (flash-softmax style) logsumexp; margin applied via mask.
# ---------------------------------------------------------------------------
def _arcface_kernel(emb_ref, lab_ref, w_ref, loss_ref,
                    embn_sc, m_sc, l_sc, t_sc, *,
                    margin, scale, num_rows, num_classes,
                    prenormalized_w, has_class_pad):
    # All program_id / num_programs reads are hoisted OUT of pl.when bodies
    # (program_id inside a cond branch does not lower on the interpret path).
    b = pl.program_id(0)
    c = pl.program_id(1)
    num_c = pl.num_programs(1)
    tb = emb_ref.shape[0]
    tc = w_ref.shape[1] if prenormalized_w else w_ref.shape[0]
    eps2 = jnp.float32(_EPS * _EPS)

    @pl.when(c == 0)
    def _init():
        # Normalize this batch tile of embeddings once; cache as bf16.
        emb = emb_ref[...].astype(jnp.float32)
        inv = lax.rsqrt(jnp.maximum(jnp.sum(emb * emb, axis=1, keepdims=True), eps2))
        embn_sc[...] = (emb * inv).astype(jnp.bfloat16)
        # Online-softmax accumulators.
        m_sc[...] = jnp.full_like(m_sc, _NEG)
        l_sc[...] = jnp.zeros_like(l_sc)
        t_sc[...] = jnp.zeros_like(t_sc)

    if prenormalized_w:
        # (TB, D) x (D, TC) NN matmul: bf16 in, f32 accumulate on the MXU.
        cos = lax.dot_general(
            embn_sc[...], w_ref[...],
            dimension_numbers=(((1,), (0,)), ((), ())),
            preferred_element_type=jnp.float32)
    else:
        # Fused path (nb == 1): raw f32 weight tile, normalize inline
        # (VPU/EUP work hidden under the weight DMA), contract over D.
        w = w_ref[...].astype(jnp.float32)
        winv = lax.rsqrt(jnp.maximum(jnp.sum(w * w, axis=1, keepdims=True), eps2))
        wn = (w * winv).astype(jnp.bfloat16)
        cos = lax.dot_general(
            embn_sc[...], wn,
            dimension_numbers=(((1,), (1,)), ((), ())),
            preferred_element_type=jnp.float32)

    s = cos * jnp.float32(scale)

    labels = lab_ref[...]                                          # (TB, 1) int32
    col = lax.broadcasted_iota(jnp.int32, (tb, tc), 1) + c * tc    # global class id
    is_target = col == labels

    # phi = cos - one_hot*margin ; logits = scale*phi   (no materialized one-hot)
    logits = jnp.where(is_target, s - jnp.float32(scale * margin), s)
    if has_class_pad:            # compiled out entirely when block_c | num_classes
        logits = jnp.where(col < num_classes, logits, jnp.float32(_NEG))

    # Online logsumexp update.
    m_prev = m_sc[...]
    m_new = jnp.maximum(m_prev, jnp.max(logits, axis=1, keepdims=True))
    l_sc[...] = (l_sc[...] * jnp.exp(m_prev - m_new)
                 + jnp.sum(jnp.exp(logits - m_new), axis=1, keepdims=True))
    m_sc[...] = m_new
    # The true class appears in exactly one class tile -> accumulate its logit.
    t_sc[...] = t_sc[...] + jnp.sum(
        jnp.where(is_target, logits, 0.0), axis=1, keepdims=True)

    @pl.when(c == num_c - 1)
    def _finalize():
        lse = m_sc[...] + jnp.log(l_sc[...])
        per_ex = lse - t_sc[...]                                    # (TB, 1)
        row = lax.broadcasted_iota(jnp.int32, (tb, 1), 0) + b * tb
        loss_ref[...] = jnp.where(row < num_rows, per_ex, 0.0)


def arcface_loss(embeddings, weight, labels, *, margin=0.3, scale=30.0,
                 block_b=None, block_c=None):
    """embeddings: (B, D) f32, weight: (C, D) f32, labels: (B,) int -> mean CE."""
    B, D = embeddings.shape
    C, D_w = weight.shape
    assert D == D_w, (D, D_w)
    block_b = _auto_block_b(B) if block_b is None else block_b
    block_c = _auto_block_c(C) if block_c is None else block_c
    assert block_b % 8 == 0, "block_b must be a multiple of 8"
    assert block_c % 128 == 0, "block_c must be a multiple of 128"

    D_pad = _round_up(D, 128)
    B_pad = _round_up(B, block_b)
    nb = B_pad // block_b
    nc = _round_up(C, block_c) // block_c
    has_class_pad = (nc * block_c) != C

    emb_p = embeddings.astype(jnp.float32)
    if (B_pad, D_pad) != (B, D):
        emb_p = jnp.pad(emb_p, ((0, B_pad - B), (0, D_pad - D)))
    lab_p = labels.astype(jnp.int32)
    if B_pad != B:
        lab_p = jnp.pad(lab_p, (0, B_pad - B))
    lab_p = lab_p.reshape(B_pad, 1)
    # Only the feature dim of the weight is padded (a no-op when D % 128 == 0);
    # the ragged class tail is masked inside the kernels -- no (C, D) HBM copy.
    w_p = weight.astype(jnp.float32)
    if D_pad != D:
        w_p = jnp.pad(w_p, ((0, 0), (0, D_pad - D)))

    common = dict(margin=float(margin), scale=float(scale),
                  num_rows=B, num_classes=C, has_class_pad=has_class_pad)
    scratches = [
        pltpu.VMEM((block_b, D_pad), jnp.bfloat16),   # normalized embedding tile
        pltpu.VMEM((block_b, 1), jnp.float32),        # running max m
        pltpu.VMEM((block_b, 1), jnp.float32),        # running sum-exp l
        pltpu.VMEM((block_b, 1), jnp.float32),        # target logit
    ]
    main_params = _mosaic_params(("parallel", "arbitrary"))

    if nb == 1:
        # ---- Fused single-pass path: read raw f32 W once, normalize per tile.
        kernel = functools.partial(_arcface_kernel, prenormalized_w=False, **common)
        per_example = pl.pallas_call(
            kernel,
            out_shape=jax.ShapeDtypeStruct((B_pad, 1), jnp.float32),
            grid=(nb, nc),
            in_specs=[
                pl.BlockSpec((block_b, D_pad), lambda b, c: (b, 0)),   # embeddings
                pl.BlockSpec((block_b, 1), lambda b, c: (b, 0)),       # labels
                pl.BlockSpec((block_c, D_pad), lambda b, c: (c, 0)),   # raw f32 W
            ],
            out_specs=pl.BlockSpec((block_b, 1), lambda b, c: (b, 0)),
            scratch_shapes=scratches,
            compiler_params=main_params,
        )(emb_p, lab_p, w_p)
    else:
        # ---- Two-pass path: normalize + transpose weights once (bf16), then
        # stream the (D_pad, block_c) tiles through an NN matmul nb times.
        w_nt = pl.pallas_call(
            functools.partial(_normalize_transpose_kernel, num_classes=C),
            out_shape=jax.ShapeDtypeStruct((D_pad, nc * block_c), jnp.bfloat16),
            grid=(nc,),
            in_specs=[pl.BlockSpec((block_c, D_pad), lambda i: (i, 0))],
            out_specs=pl.BlockSpec((D_pad, block_c), lambda i: (0, i)),
            compiler_params=_mosaic_params(("parallel",)),
        )(w_p)

        kernel = functools.partial(_arcface_kernel, prenormalized_w=True, **common)
        per_example = pl.pallas_call(
            kernel,
            out_shape=jax.ShapeDtypeStruct((B_pad, 1), jnp.float32),
            grid=(nb, nc),
            in_specs=[
                pl.BlockSpec((block_b, D_pad), lambda b, c: (b, 0)),   # embeddings
                pl.BlockSpec((block_b, 1), lambda b, c: (b, 0)),       # labels
                pl.BlockSpec((D_pad, block_c), lambda b, c: (0, c)),   # bf16 Wn^T
            ],
            out_specs=pl.BlockSpec((block_b, 1), lambda b, c: (b, 0)),
            scratch_shapes=scratches,
            compiler_params=main_params,
        )(emb_p, lab_p, w_nt)

    return jnp.sum(per_example) / jnp.float32(B)


def arcface_loss_ref(embeddings, weight, labels, *, margin=0.3, scale=30.0,
                     matmul_dtype=jnp.float32):
    """Pure-JAX reference.  matmul_dtype=bf16 reproduces the kernel's numerics."""
    eps2 = jnp.float32(_EPS * _EPS)
    emb_n = embeddings * lax.rsqrt(
        jnp.maximum(jnp.sum(embeddings * embeddings, axis=1, keepdims=True), eps2))
    w_n = weight * lax.rsqrt(
        jnp.maximum(jnp.sum(weight * weight, axis=1, keepdims=True), eps2))
    cos = jnp.dot(emb_n.astype(matmul_dtype), w_n.astype(matmul_dtype).T,
                  preferred_element_type=jnp.float32)
    one_hot = jax.nn.one_hot(labels, cos.shape[1], dtype=jnp.float32)
    logits = (cos - one_hot * margin) * scale
    logp = jax.nn.log_softmax(logits, axis=1)
    return -jnp.mean(jnp.sum(one_hot * logp, axis=1))


if __name__ == "__main__":
    key = jax.random.PRNGKey(0)
    k1, k2, k3 = jax.random.split(key, 3)

    def make_inputs(k, B, D, C):
        k_emb, k_w, k_lab = jax.random.split(k, 3)
        emb = jax.random.normal(k_emb, (B, D), dtype=jnp.float32)
        bound = (6.0 / (C + D)) ** 0.5                 # xavier_uniform_
        w = jax.random.uniform(k_w, (C, D), dtype=jnp.float32,
                               minval=-bound, maxval=bound)
        lab = jax.random.randint(k_lab, (B,), 0, C, dtype=jnp.int32)
        return emb, w, lab

    def check(emb, w, lab, **kw):
        loss = arcface_loss(emb, w, lab, margin=0.3, scale=30.0, **kw)
        jax.block_until_ready(loss)
        ref_b = arcface_loss_ref(emb, w, lab, margin=0.3, scale=30.0,
                                 matmul_dtype=jnp.bfloat16)
        ref_f = arcface_loss_ref(emb, w, lab, margin=0.3, scale=30.0,
                                 matmul_dtype=jnp.float32)
        assert jnp.allclose(loss, ref_b, rtol=5e-3, atol=5e-3), (loss, ref_b)
        assert jnp.allclose(loss, ref_f, rtol=5e-2, atol=5e-2), (loss, ref_f)

    # Case 1: tiny module-sized demo (B=8, D=32, C=16), auto tiles -> fused path.
    check(*make_inputs(k1, 8, 32, 16))
    # Case 2: multiple batch/class tiles -> two-pass path (normalize+transpose
    # kernel + NN-matmul main kernel), ragged class tail, padded batch rows.
    check(*make_inputs(k2, 24, 40, 300), block_b=8, block_c=128)
    # Case 3: fused path with several class tiles and a ragged class tail.
    check(*make_inputs(k3, 16, 32, 300), block_c=128)

    print("KERNEL_OK")
</pallas_src>

<mosaic_0001>
module attributes {stable_mosaic.version = 11 : i64} {
  func.func @_arcface_kernel(%arg0: i32, %arg1: i32, %arg2: memref<8x128xf32, #tpu.memory_space<vmem>>, %arg3: memref<8x1xi32, #tpu.memory_space<vmem>>, %arg4: memref<256x128xf32, #tpu.memory_space<vmem>>, %arg5: memref<8x1xf32, #tpu.memory_space<vmem>>, %arg6: memref<8x128xbf16, #tpu.memory_space<vmem>>, %arg7: memref<8x1xf32, #tpu.memory_space<vmem>>, %arg8: memref<8x1xf32, #tpu.memory_space<vmem>>, %arg9: memref<8x1xf32, #tpu.memory_space<vmem>>) attributes {dimension_semantics = [#tpu.dimension_semantics<parallel>, #tpu.dimension_semantics<arbitrary>], iteration_bounds = array<i64: 1, 1>, scalar_prefetch = 0 : i64, scratch_operands = 4 : i64, tpu.core_type = #tpu.core_type<tc>, window_params = [{transform_indices = @transform_0, window_bounds = array<i64: 8, 128>}, {transform_indices = @transform_1, window_bounds = array<i64: 8, 1>}, {transform_indices = @transform_2, window_bounds = array<i64: 256, 128>}, {transform_indices = @transform_3, window_bounds = array<i64: 8, 1>}]} {
    %c0_i32 = arith.constant 0 : i32
    %0 = arith.cmpi eq, %arg1, %c0_i32 : i32
    %1 = arith.extui %0 : i1 to i32
    %cst = arith.constant 1.000000e-24 : f32
    %c0_i32_0 = arith.constant 0 : i32
    %2 = arith.cmpi ne, %1, %c0_i32_0 : i32
    scf.if %2 {
      %c0_30 = arith.constant 0 : index
      %c0_31 = arith.constant 0 : index
      %57 = vector.load %arg2[%c0_30, %c0_31] : memref<8x128xf32, #tpu.memory_space<vmem>>, vector<8x128xf32>
      %58 = arith.mulf %57, %57 : vector<8x128xf32>
      %cst_32 = arith.constant dense<0.000000e+00> : vector<8xf32>
      %59 = vector.multi_reduction <add>, %58, %cst_32 [1] : vector<8x128xf32> to vector<8xf32>
      %60 = vector.shape_cast %59 : vector<8xf32> to vector<8x1xf32>
      %61 = vector.broadcast %cst : f32 to vector<8x1xf32>
      %62 = arith.maximumf %60, %61 : vector<8x1xf32>
      %63 = math.rsqrt %62 : vector<8x1xf32>
      %64 = vector.broadcast %63 : vector<8x1xf32> to vector<8x128xf32>
      %65 = arith.mulf %57, %64 : vector<8x128xf32>
      %66 = arith.truncf %65 : vector<8x128xf32> to vector<8x128xbf16>
      %c0_33 = arith.constant 0 : index
      %c0_34 = arith.constant 0 : index
      %67 = vector.load %arg6[%c0_33, %c0_34] : memref<8x128xbf16, #tpu.memory_space<vmem>>, vector<8x128xbf16>
      tpu.vector_store %arg6[%c0_33, %c0_34], %66 {strides = array<i32>} : memref<8x128xbf16, #tpu.memory_space<vmem>>, vector<8x128xbf16>,
      %cst_35 = arith.constant -1.000000e+30 : f32
      %68 = vector.broadcast %cst_35 : f32 to vector<8x1xf32>
      %c0_36 = arith.constant 0 : index
      %c0_37 = arith.constant 0 : index
      %69 = vector.load %arg7[%c0_36, %c0_37] : memref<8x1xf32, #tpu.memory_space<vmem>>, vector<8x1xf32>
      tpu.vector_store %arg7[%c0_36, %c0_37], %68 {strides = array<i32>} : memref<8x1xf32, #tpu.memory_space<vmem>>, vector<8x1xf32>,
      %cst_38 = arith.constant 0.000000e+00 : f32
      %70 = vector.broadcast %cst_38 : f32 to vector<8x1xf32>
      %c0_39 = arith.constant 0 : index
      %c0_40 = arith.constant 0 : index
      %71 = vector.load %arg8[%c0_39, %c0_40] : memref<8x1xf32, #tpu.memory_space<vmem>>, vector<8x1xf32>
      tpu.vector_store %arg8[%c0_39, %c0_40], %70 {strides = array<i32>} : memref<8x1xf32, #tpu.memory_space<vmem>>, vector<8x1xf32>,
      %cst_41 = arith.constant 0.000000e+00 : f32
      %72 = vector.broadcast %cst_41 : f32 to vector<8x1xf32>
      %c0_42 = arith.constant 0 : index
      %c0_43 = arith.constant 0 : index
      %73 = vector.load %arg9[%c0_42, %c0_43] : memref<8x1xf32, #tpu.memory_space<vmem>>, vector<8x1xf32>
      tpu.vector_store %arg9[%c0_42, %c0_43], %72 {strides = array<i32>} : memref<8x1xf32, #tpu.memory_space<vmem>>, vector<8x1xf32>,
    } else {
    }
    %c0 = arith.constant 0 : index
    %c0_1 = arith.constant 0 : index
    %3 = vector.load %arg4[%c0, %c0_1] : memref<256x128xf32, #tpu.memory_space<vmem>>, vector<256x128xf32>
    %4 = arith.mulf %3, %3 : vector<256x128xf32>
    %cst_2 = arith.constant dense<0.000000e+00> : vector<256xf32>
    %5 = vector.multi_reduction <add>, %4, %cst_2 [1] : vector<256x128xf32> to vector<256xf32>
    %6 = vector.shape_cast %5 : vector<256xf32> to vector<256x1xf32>
    %cst_3 = arith.constant 1.000000e-24 : f32
    %7 = vector.broadcast %cst_3 : f32 to vector<256x1xf32>
    %8 = arith.maximumf %6, %7 : vector<256x1xf32>
    %9 = math.rsqrt %8 : vector<256x1xf32>
    %10 = vector.broadcast %9 : vector<256x1xf32> to vector<256x128xf32>
    %11 = arith.mulf %3, %10 : vector<256x128xf32>
    %12 = arith.truncf %11 : vector<256x128xf32> to vector<256x128xbf16>
    %c0_4 = arith.constant 0 : index
    %c0_5 = arith.constant 0 : index
    %13 = vector.load %arg6[%c0_4, %c0_5] : memref<8x128xbf16, #tpu.memory_space<vmem>>, vector<8x128xbf16>
    %cst_6 = arith.constant dense<0.000000e+00> : vector<8x256xf32>
    %14 = tpu.matmul %13, %12, %cst_6 {dimension_numbers = #tpu.dot_dimension_numbers<[1], [1], [0], [0], [0, 0, 1, 0], [], []>} : vector<8x128xbf16>, vector<256x128xbf16>, vector<8x256xf32> -> vector<8x256xf32>
    %cst_7 = arith.constant 3.000000e+01 : f32
    %15 = vector.broadcast %cst_7 : f32 to vector<8x256xf32>
    %16 = arith.mulf %14, %15 : vector<8x256xf32>
    %c0_8 = arith.constant 0 : index
    %c0_9 = arith.constant 0 : index
    %17 = vector.load %arg3[%c0_8, %c0_9] : memref<8x1xi32, #tpu.memory_space<vmem>>, vector<8x1xi32>
    %18 = tpu.iota {dimensions = array<i32: 1>} : vector<8x256xi32>
    %c256_i32 = arith.constant 256 : i32
    %19 = arith.muli %arg1, %c256_i32 : i32
    %20 = vector.broadcast %19 : i32 to vector<8x256xi32>
    %21 = arith.addi %18, %20 : vector<8x256xi32>
    %22 = vector.broadcast %17 : vector<8x1xi32> to vector<8x256xi32>
    %23 = arith.cmpi eq, %21, %22 : vector<8x256xi32>
    %cst_10 = arith.constant 9.000000e+00 : f32
    %24 = vector.broadcast %cst_10 : f32 to vector<8x256xf32>
    %25 = arith.subf %16, %24 : vector<8x256xf32>
    %26 = arith.select %23, %25, %16 : vector<8x256xi1>, vector<8x256xf32>
    %c16_i32 = arith.constant 16 : i32
    %27 = vector.broadcast %c16_i32 : i32 to vector<8x256xi32>
    %28 = arith.cmpi slt, %21, %27 : vector<8x256xi32>
    %cst_11 = arith.constant -1.000000e+30 : f32
    %29 = vector.broadcast %cst_11 : f32 to vector<8x256xf32>
    %30 = arith.select %28, %26, %29 : vector<8x256xi1>, vector<8x256xf32>
    %c0_12 = arith.constant 0 : index
    %c0_13 = arith.constant 0 : index
    %31 = vector.load %arg7[%c0_12, %c0_13] : memref<8x1xf32, #tpu.memory_space<vmem>>, vector<8x1xf32>
    %cst_14 = arith.constant dense<0xFF800000> : vector<8xf32>
    %32 = vector.multi_reduction <maximumf>, %30, %cst_14 [1] : vector<8x256xf32> to vector<8xf32>
    %33 = vector.shape_cast %32 : vector<8xf32> to vector<8x1xf32>
    %34 = arith.maximumf %31, %33 : vector<8x1xf32>
    %c0_15 = arith.constant 0 : index
    %c0_16 = arith.constant 0 : index
    %35 = vector.load %arg8[%c0_15, %c0_16] : memref<8x1xf32, #tpu.memory_space<vmem>>, vector<8x1xf32>
    %36 = arith.subf %31, %34 : vector<8x1xf32>
    %37 = math.exp %36 : vector<8x1xf32>
    %38 = arith.mulf %35, %37 : vector<8x1xf32>
    %39 = vector.broadcast %34 : vector<8x1xf32> to vector<8x256xf32>
    %40 = arith.subf %30, %39 : vector<8x256xf32>
    %41 = math.exp %40 : vector<8x256xf32>
    %cst_17 = arith.constant dense<0.000000e+00> : vector<8xf32>
    %42 = vector.multi_reduction <add>, %41, %cst_17 [1] : vector<8x256xf32> to vector<8xf32>
    %43 = vector.shape_cast %42 : vector<8xf32> to vector<8x1xf32>
    %44 = arith.addf %38, %43 : vector<8x1xf32>
    %c0_18 = arith.constant 0 : index
    %c0_19 = arith.constant 0 : index
    %45 = vector.load %arg8[%c0_18, %c0_19] : memref<8x1xf32, #tpu.memory_space<vmem>>, vector<8x1xf32>
    tpu.vector_store %arg8[%c0_18, %c0_19], %44 {strides = array<i32>} : memref<8x1xf32, #tpu.memory_space<vmem>>, vector<8x1xf32>,
    %c0_20 = arith.constant 0 : index
    %c0_21 = arith.constant 0 : index
    %46 = vector.load %arg7[%c0_20, %c0_21] : memref<8x1xf32, #tpu.memory_space<vmem>>, vector<8x1xf32>
    tpu.vector_store %arg7[%c0_20, %c0_21], %34 {strides = array<i32>} : memref<8x1xf32, #tpu.memory_space<vmem>>, vector<8x1xf32>,
    %c0_22 = arith.constant 0 : index
    %c0_23 = arith.constant 0 : index
    %47 = vector.load %arg9[%c0_22, %c0_23] : memref<8x1xf32, #tpu.memory_space<vmem>>, vector<8x1xf32>
    %cst_24 = arith.constant 0.000000e+00 : f32
    %48 = vector.broadcast %cst_24 : f32 to vector<8x256xf32>
    %49 = arith.select %23, %30, %48 : vector<8x256xi1>, vector<8x256xf32>
    %cst_25 = arith.constant dense<0.000000e+00> : vector<8xf32>
    %50 = vector.multi_reduction <add>, %49, %cst_25 [1] : vector<8x256xf32> to vector<8xf32>
    %51 = vector.shape_cast %50 : vector<8xf32> to vector<8x1xf32>
    %52 = arith.addf %47, %51 : vector<8x1xf32>
    %c0_26 = arith.constant 0 : index
    %c0_27 = arith.constant 0 : index
    %53 = vector.load %arg9[%c0_26, %c0_27] : memref<8x1xf32, #tpu.memory_space<vmem>>, vector<8x1xf32>
    tpu.vector_store %arg9[%c0_26, %c0_27], %52 {strides = array<i32>} : memref<8x1xf32, #tpu.memory_space<vmem>>, vector<8x1xf32>,
    %c0_i32_28 = arith.constant 0 : i32
    %54 = arith.cmpi eq, %arg1, %c0_i32_28 : i32
    %55 = arith.extui %54 : i1 to i32
    %c0_i32_29 = arith.constant 0 : i32
    %56 = arith.cmpi ne, %55, %c0_i32_29 : i32
    scf.if %56 {
      %c0_30 = arith.constant 0 : index
      %c0_31 = arith.constant 0 : index
      %57 = vector.load %arg7[%c0_30, %c0_31] : memref<8x1xf32, #tpu.memory_space<vmem>>, vector<8x1xf32>
      %c0_32 = arith.constant 0 : index
      %c0_33 = arith.constant 0 : index
      %58 = vector.load %arg8[%c0_32, %c0_33] : memref<8x1xf32, #tpu.memory_space<vmem>>, vector<8x1xf32>
      %59 = math.log %58 : vector<8x1xf32>
      %60 = arith.addf %57, %59 : vector<8x1xf32>
      %c0_34 = arith.constant 0 : index
      %c0_35 = arith.constant 0 : index
      %61 = vector.load %arg9[%c0_34, %c0_35] : memref<8x1xf32, #tpu.memory_space<vmem>>, vector<8x1xf32>
      %62 = arith.subf %60, %61 : vector<8x1xf32>
      %63 = tpu.iota {dimensions = array<i32: 0>} : vector<8x1xi32>
      %c8_i32 = arith.constant 8 : i32
      %64 = arith.muli %arg0, %c8_i32 : i32
      %65 = vector.broadcast %64 : i32 to vector<8x1xi32>
      %66 = arith.addi %63, %65 : vector<8x1xi32>
      %c8_i32_36 = arith.constant 8 : i32
      %67 = vector.broadcast %c8_i32_36 : i32 to vector<8x1xi32>
      %68 = arith.cmpi slt, %66, %67 : vector<8x1xi32>
      %cst_37 = arith.constant 0.000000e+00 : f32
      %69 = vector.broadcast %cst_37 : f32 to vector<8x1xf32>
      %70 = arith.select %68, %62, %69 : vector<8x1xi1>, vector<8x1xf32>
      %c0_38 = arith.constant 0 : index
      %c0_39 = arith.constant 0 : index
      %71 = vector.load %arg5[%c0_38, %c0_39] : memref<8x1xf32, #tpu.memory_space<vmem>>, vector<8x1xf32>
      tpu.vector_store %arg5[%c0_38, %c0_39], %70 {strides = array<i32>} : memref<8x1xf32, #tpu.memory_space<vmem>>, vector<8x1xf32>,
    } else {
    }
    return
  }
  func.func @transform_0(%arg0: i32, %arg1: i32) -> (i32, i32) {
    %c0_i32 = arith.constant 0 : i32
    %c0_i32_0 = arith.constant 0 : i32
    return %arg0, %c0_i32 : i32, i32
  }
  func.func @transform_1(%arg0: i32, %arg1: i32) -> (i32, i32) {
    %c0_i32 = arith.constant 0 : i32
    %c0_i32_0 = arith.constant 0 : i32
    return %arg0, %c0_i32 : i32, i32
  }
  func.func @transform_2(%arg0: i32, %arg1: i32) -> (i32, i32) {
    %c0_i32 = arith.constant 0 : i32
    %c0_i32_0 = arith.constant 0 : i32
    return %arg1, %c0_i32 : i32, i32
  }
  func.func @transform_3(%arg0: i32, %arg1: i32) -> (i32, i32) {
    %c0_i32 = arith.constant 0 : i32
    %c0_i32_0 = arith.constant 0 : i32
    return %arg0, %c0_i32 : i32, i32
  }
}

</mosaic_0001>

<llo_original>
// kernel: tpu_custom_call.1
$region0: #{tpu_custom_call.1}
  #allocation0 [shape = 'u32[]', space=smem, size = 0x4, offset = 0x4, fixed_abs, tag = 'smem constant byte address 0x4 - core index']
  #allocation1 [shape = 'u32[72,128]{1,0:T(1,128)}', space=vmem, size = 0x9000, scoped, tag = 'internal scratch']
  #allocation2 [shape = 'bf16[8,128]{1,0:T(8,128)(2,1)}', space=vmem, size = 0x800, scoped, tag = 'scratch operand']
  #allocation3 [shape = 'f32[8,1]{1,0:T(8,128)}', space=vmem, size = 0x1000, scoped, tag = 'scratch operand']
  #allocation4 [shape = 'f32[8,1]{1,0:T(8,128)}', space=vmem, size = 0x1000, scoped, tag = 'scratch operand']
  #allocation5 [shape = 'f32[8,1]{1,0:T(8,128)}', space=vmem, size = 0x1000, scoped, tag = 'scratch operand']
  %s0 = inlined_call_operand.vmem [shape: f32[8,128], index: 0, kind: input, shape index: {}]
  %s1 = inlined_call_operand.vmem [shape: s32[8,1], index: 1, kind: input, shape index: {}]
  %s2 = inlined_call_operand.hbm [shape: f32[16,128], index: 2, kind: input, shape index: {}]
  %s3 = inlined_call_operand.vmem [shape: f32[8,1], index: 3, kind: output, shape index: {}]
  %s4 = sld [smem:[#allocation0]]
  $region34: #{tpu_custom_call.1} parent=0
    _
  %s6 = ssub.s32 1, %s4
  %s7 = scalar_select 0, %s6, %s4
  $region1: #{tpu_custom_call.1} parent=0
    #allocation6 [shape = 'u8[131072]{0}', space=vmem, size = 0x20000, scoped, tag = 'input window, operand 2, single buffered']
    #allocation7 [shape = 's32[1]{0}', space=sflag, size = 0x4, scoped, tag = 'scoped memory for tpu_custom_call.1']
    %8 = vsyncpa [#allocation7], 0
    // Predicated region
    $region2: #{tpu_custom_call.1} parent=1 // pred_check
      _
    $region3: #{tpu_custom_call.1} parent=1 // pred_check_branch
      %10 = sbr.rel (0) target = $region5
    $region4: #{tpu_custom_call.1} parent=1 // pred_region
      _
    $region5: #{tpu_custom_call.1} parent=1 // pred_fallthru
      _
    // Predicated region
    $region6: #{tpu_custom_call.1} parent=1 // pred_check
      _
    $region7: #{tpu_custom_call.1} parent=1 // pred_check_branch
      %12 = sbr.rel (0) target = $region9
    $region8: #{tpu_custom_call.1} parent=1 // pred_region
      _
    $region9: #{tpu_custom_call.1} parent=1 // pred_fallthru
      _
    // Predicated region
    $region10: #{tpu_custom_call.1} parent=1 // pred_check
      _
    $region11: #{tpu_custom_call.1} parent=1 // pred_check_branch
      %14 = sbr.rel (0) target = $region13
    $region12: #{tpu_custom_call.1} parent=1 // pred_region
      %16 = vsyncadd [#allocation7], 3840
      %s17 = sshll.u32 %s2, 4
      %s18 = int_to_ptr.hbm [resolvable:$true] %s17
      %s19 = sshll.u32 [#allocation6], 4
      %s20 = int_to_ptr.vmem [resolvable:$true] %s19
      %25 = dma.hbm_to_vmem [thread:$0]  %s18, 256, %s20, [#allocation7], 128, 128, 8
    $region13: #{tpu_custom_call.1} parent=1 // pred_fallthru
      _
    // Predicated region
    $region14: #{tpu_custom_call.1} parent=1 // pred_check
      _
    $region15: #{tpu_custom_call.1} parent=1 // pred_check_branch
      %27 = sbr.rel (0) target = $region17
    $region16: #{tpu_custom_call.1} parent=1 // pred_region
      %29 = dma.done [#allocation7], 4096
    $region17: #{tpu_custom_call.1} parent=1 // pred_fallthru
      _
    %p30 = scmp.eq.s32.totalorder 0, 0
    // Predicated region
    $region18: #{tpu_custom_call.1} parent=1 // pred_check
      %p31 = pneg %p30
    $region19: #{tpu_custom_call.1} parent=1 // pred_check_branch
      %33 = sbr.rel (%p31) target = $region21
    $region20: #{tpu_custom_call.1} parent=1 // pred_region
      %v34 = vld [vmem:[%s0] sm:$0xff]
      %v35 = vmul.f32 %v34, %v34
      %36 = vadd.xlane.f32.xlu0 %v35
      %v37 = vpop.xlane.xlu0 %36
      %v38 = vmax.f32 %v37, 1e-24
      %v39 = vrsqrt.pop %v38
      %v40 = vmul.f32 %v39, %v38
      %v41 = vmul.f32 %v40, %v39
      %v42 = vmul.f32 0.5, %v41
      %v43 = vsub.f32 1.5, %v42
      %v44 = vmul.f32 %v39, %v43
      %vm45 = vweird.f32 %v38
      %vm46 = vweird.f32 %v39
      %vm47 = vmor %vm45, %vm46
      %v48 = vsel %vm47, %v39, %v44
      %v49 = vmul.f32 %v34, %v48
      %v50 = vpack.c.bf16 %v49, %v49
      %51 = vst [vmem:[#allocation2] sm:$0xf] %v50
      %vm52 = vcmask 7168
      %53 = vst.msk [vmem:[#allocation3] sm:$0xff] %vm52, -1e+30
      %54 = vst.msk [vmem:[#allocation4] sm:$0xff] %vm52, 0.0
      %55 = vst.msk [vmem:[#allocation5] sm:$0xff] %vm52, 0.0
    $region21: #{tpu_custom_call.1} parent=1 // pred_fallthru
      _
    %v56 = vld [vmem:[#allocation6] sm:$0xff]
    %v57 = vld [vmem:[#allocation6 + $0x8] sm:$0xff]
    %v58 = vld [vmem:[#allocation6 + $0x10] sm:$0xff]
    %v59 = vld [vmem:[#allocation6 + $0x18] sm:$0xff]
    %v60 = vld [vmem:[#allocation6 + $0x20] sm:$0xff]
    %v61 = vld [vmem:[#allocation6 + $0x28] sm:$0xff]
    %v62 = vld [vmem:[#allocation6 + $0x30] sm:$0xff]
    %v63 = vld [vmem:[#allocation6 + $0x38] sm:$0xff]
    %v64 = vld [vmem:[#allocation6 + $0x40] sm:$0xff]
    %v65 = vld [vmem:[#allocation6 + $0x48] sm:$0xff]
    %v66 = vld [vmem:[#allocation6 + $0x50] sm:$0xff]
    %v67 = vld [vmem:[#allocation6 + $0x58] sm:$0xff]
    %v68 = vld [vmem:[#allocation6 + $0x60] sm:$0xff]
    %v69 = vld [vmem:[#allocation6 + $0x68] sm:$0xff]
    %v70 = vld [vmem:[#allocation6 + $0x70] sm:$0xff]
    %v71 = vld [vmem:[#allocation6 + $0x78] sm:$0xff]
    %v72 = vld [vmem:[#allocation6 + $0x80] sm:$0xff]
    %v73 = vld [vmem:[#allocation6 + $0x88] sm:$0xff]
    %v74 = vld [vmem:[#allocation6 + $0x90] sm:$0xff]
    %v75 = vld [vmem:[#allocation6 + $0x98] sm:$0xff]
    %v76 = vld [vmem:[#allocation6 + $0xa0] sm:$0xff]
    %v77 = vld [vmem:[#allocation6 + $0xa8] sm:$0xff]
    %v78 = vld [vmem:[#allocation6 + $0xb0] sm:$0xff]
    %v79 = vld [vmem:[#allocation6 + $0xb8] sm:$0xff]
    %v80 = vld [vmem:[#allocation6 + $0xc0] sm:$0xff]
    %v81 = vld [vmem:[#allocation6 + $0xc8] sm:$0xff]
    %v82 = vld [vmem:[#allocation6 + $0xd0] sm:$0xff]
    %v83 = vld [vmem:[#allocation6 + $0xd8] sm:$0xff]
    %v84 = vld [vmem:[#allocation6 + $0xe0] sm:$0xff]
    %v85 = vld [vmem:[#allocation6 + $0xe8] sm:$0xff]
    %v86 = vld [vmem:[#allocation6 + $0xf0] sm:$0xff]
    %v87 = vld [vmem:[#allocation6 + $0xf8] sm:$0xff]
    %v88 = vmul.f32 %v56, %v56
    %v89 = vmul.f32 %v57, %v57
    %v90 = vmul.f32 %v58, %v58
    %v91 = vmul.f32 %v59, %v59
    %v92 = vmul.f32 %v60, %v60
    %v93 = vmul.f32 %v61, %v61
    %v94 = vmul.f32 %v62, %v62
    %v95 = vmul.f32 %v63, %v63
    %v96 = vmul.f32 %v64, %v64
    %v97 = vmul.f32 %v65, %v65
    %v98 = vmul.f32 %v66, %v66
    %v99 = vmul.f32 %v67, %v67
    %v100 = vmul.f32 %v68, %v68
    %v101 = vmul.f32 %v69, %v69
    %v102 = vmul.f32 %v70, %v70
    %v103 = vmul.f32 %v71, %v71
    %v104 = vmul.f32 %v72, %v72
    %v105 = vmul.f32 %v73, %v73
    %v106 = vmul.f32 %v74, %v74
    %v107 = vmul.f32 %v75, %v75
    %v108 = vmul.f32 %v76, %v76
    %v109 = vmul.f32 %v77, %v77
    %v110 = vmul.f32 %v78, %v78
    %v111 = vmul.f32 %v79, %v79
    %v112 = vmul.f32 %v80, %v80
    %v113 = vmul.f32 %v81, %v81
    %v114 = vmul.f32 %v82, %v82
    %v115 = vmul.f32 %v83, %v83
    %v116 = vmul.f32 %v84, %v84
    %v117 = vmul.f32 %v85, %v85
    %v118 = vmul.f32 %v86, %v86
    %v119 = vmul.f32 %v87, %v87
    %120 = vadd.xlane.f32.xlu0 %v88
    %v121 = vpop.xlane.xlu0 %120
    %122 = vadd.xlane.f32.xlu0 %v89
    %v123 = vpop.xlane.xlu0 %122
    %124 = vadd.xlane.f32.xlu0 %v90
    %v125 = vpop.xlane.xlu0 %124
    %126 = vadd.xlane.f32.xlu0 %v91
    %v127 = vpop.xlane.xlu0 %126
    %128 = vadd.xlane.f32.xlu0 %v92
    %v129 = vpop.xlane.xlu0 %128
    %130 = vadd.xlane.f32.xlu0 %v93
    %v131 = vpop.xlane.xlu0 %130
    %132 = vadd.xlane.f32.xlu0 %v94
    %v133 = vpop.xlane.xlu0 %132
    %134 = vadd.xlane.f32.xlu0 %v95
    %v135 = vpop.xlane.xlu0 %134
    %136 = vadd.xlane.f32.xlu0 %v96
    %v137 = vpop.xlane.xlu0 %136
    %138 = vadd.xlane.f32.xlu0 %v97
    %v139 = vpop.xlane.xlu0 %138
    %140 = vadd.xlane.f32.xlu0 %v98
    %v141 = vpop.xlane.xlu0 %140
    %142 = vadd.xlane.f32.xlu0 %v99
    %v143 = vpop.xlane.xlu0 %142
    %144 = vadd.xlane.f32.xlu0 %v100
    %v145 = vpop.xlane.xlu0 %144
    %146 = vadd.xlane.f32.xlu0 %v101
    %v147 = vpop.xlane.xlu0 %146
    %148 = vadd.xlane.f32.xlu0 %v102
    %v149 = vpop.xlane.xlu0 %148
    %150 = vadd.xlane.f32.xlu0 %v103
    %v151 = vpop.xlane.xlu0 %150
    %152 = vadd.xlane.f32.xlu0 %v104
    %v153 = vpop.xlane.xlu0 %152
    %154 = vadd.xlane.f32.xlu0 %v105
    %v155 = vpop.xlane.xlu0 %154
    %156 = vadd.xlane.f32.xlu0 %v106
    %v157 = vpop.xlane.xlu0 %156
    %158 = vadd.xlane.f32.xlu0 %v107
    %v159 = vpop.xlane.xlu0 %158
    %160 = vadd.xlane.f32.xlu0 %v108
    %v161 = vpop.xlane.xlu0 %160
    %162 = vadd.xlane.f32.xlu0 %v109
    %v163 = vpop.xlane.xlu0 %162
    %164 = vadd.xlane.f32.xlu0 %v110
    %v165 = vpop.xlane.xlu0 %164
    %166 = vadd.xlane.f32.xlu0 %v111
    %v167 = vpop.xlane.xlu0 %166
    %168 = vadd.xlane.f32.xlu0 %v112
    %v169 = vpop.xlane.xlu0 %168
    %170 = vadd.xlane.f32.xlu0 %v113
    %v171 = vpop.xlane.xlu0 %170
    %172 = vadd.xlane.f32.xlu0 %v114
    %v173 = vpop.xlane.xlu0 %172
    %174 = vadd.xlane.f32.xlu0 %v115
    %v175 = vpop.xlane.xlu0 %174
    %176 = vadd.xlane.f32.xlu0 %v116
    %v177 = vpop.xlane.xlu0 %176
    %178 = vadd.xlane.f32.xlu0 %v117
    %v179 = vpop.xlane.xlu0 %178
    %180 = vadd.xlane.f32.xlu0 %v118
    %v181 = vpop.xlane.xlu0 %180
    %182 = vadd.xlane.f32.xlu0 %v119
    %v183 = vpop.xlane.xlu0 %182
    %v184 = vmax.f32 %v121, 1e-24
    %v185 = vmax.f32 %v123, 1e-24
    %v186 = vmax.f32 %v125, 1e-24
    %v187 = vmax.f32 %v127, 1e-24
    %v188 = vmax.f32 %v129, 1e-24
    %v189 = vmax.f32 %v131, 1e-24
    %v190 = vmax.f32 %v133, 1e-24
    %v191 = vmax.f32 %v135, 1e-24
    %v192 = vmax.f32 %v137, 1e-24
    %v193 = vmax.f32 %v139, 1e-24
    %v194 = vmax.f32 %v141, 1e-24
    %v195 = vmax.f32 %v143, 1e-24
    %v196 = vmax.f32 %v145, 1e-24
    %v197 = vmax.f32 %v147, 1e-24
    %v198 = vmax.f32 %v149, 1e-24
    %v199 = vmax.f32 %v151, 1e-24
    %v200 = vmax.f32 %v153, 1e-24
    %v201 = vmax.f32 %v155, 1e-24
    %v202 = vmax.f32 %v157, 1e-24
    %v203 = vmax.f32 %v159, 1e-24
    %v204 = vmax.f32 %v161, 1e-24
    %v205 = vmax.f32 %v163, 1e-24
    %v206 = vmax.f32 %v165, 1e-24
    %v207 = vmax.f32 %v167, 1e-24
    %v208 = vmax.f32 %v169, 1e-24
    %v209 = vmax.f32 %v171, 1e-24
    %v210 = vmax.f32 %v173, 1e-24
    %v211 = vmax.f32 %v175, 1e-24
    %v212 = vmax.f32 %v177, 1e-24
    %v213 = vmax.f32 %v179, 1e-24
    %v214 = vmax.f32 %v181, 1e-24
    %v215 = vmax.f32 %v183, 1e-24
    %v216 = vrsqrt.pop %v184
    %v217 = vmul.f32 %v216, %v184
    %v218 = vmul.f32 %v217, %v216
    %v219 = vmul.f32 0.5, %v218
    %v220 = vsub.f32 1.5, %v219
    %v221 = vmul.f32 %v216, %v220
    %vm222 = vweird.f32 %v184
    %vm223 = vweird.f32 %v216
    %vm224 = vmor %vm222, %vm223
    %v225 = vsel %vm224, %v216, %v221
    %v226 = vrsqrt.pop %v185
    %v227 = vmul.f32 %v226, %v185
    %v228 = vmul.f32 %v227, %v226
    %v229 = vmul.f32 0.5, %v228
    %v230 = vsub.f32 1.5, %v229
    %v231 = vmul.f32 %v226, %v230
    %vm232 = vweird.f32 %v185
    %vm233 = vweird.f32 %v226
    %vm234 = vmor %vm232, %vm233
    %v235 = vsel %vm234, %v226, %v231
    %v236 = vrsqrt.pop %v186
    %v237 = vmul.f32 %v236, %v186
    %v238 = vmul.f32 %v237, %v236
    %v239 = vmul.f32 0.5, %v238
    %v240 = vsub.f32 1.5, %v239
    %v241 = vmul.f32 %v236, %v240
    %vm242 = vweird.f32 %v186
    %vm243 = vweird.f32 %v236
    %vm244 = vmor %vm242, %vm243
    %v245 = vsel %vm244, %v236, %v241
    %v246 = vrsqrt.pop %v187
    %v247 = vmul.f32 %v246, %v187
    %v248 = vmul.f32 %v247, %v246
    %v249 = vmul.f32 0.5, %v248
    %v250 = vsub.f32 1.5, %v249
    %v251 = vmul.f32 %v246, %v250
    %vm252 = vweird.f32 %v187
    %vm253 = vweird.f32 %v246
    %vm254 = vmor %vm252, %vm253
    %v255 = vsel %vm254, %v246, %v251
    %v256 = vrsqrt.pop %v188
    %v257 = vmul.f32 %v256, %v188
    %v258 = vmul.f32 %v257, %v256
    %v259 = vmul.f32 0.5, %v258
    %v260 = vsub.f32 1.5, %v259
    %v261 = vmul.f32 %v256, %v260
    %vm262 = vweird.f32 %v188
    %vm263 = vweird.f32 %v256
    %vm264 = vmor %vm262, %vm263
    %v265 = vsel %vm264, %v256, %v261
    %v266 = vrsqrt.pop %v189
    %v267 = vmul.f32 %v266, %v189
    %v268 = vmul.f32 %v267, %v266
    %v269 = vmul.f32 0.5, %v268
    %v270 = vsub.f32 1.5, %v269
    %v271 = vmul.f32 %v266, %v270
    %vm272 = vweird.f32 %v189
    %vm273 = vweird.f32 %v266
    %vm274 = vmor %vm272, %vm273
    %v275 = vsel %vm274, %v266, %v271
    %v276 = vrsqrt.pop %v190
    %v277 = vmul.f32 %v276, %v190
    %v278 = vmul.f32 %v277, %v276
    %v279 = vmul.f32 0.5, %v278
    %v280 = vsub.f32 1.5, %v279
    %v281 = vmul.f32 %v276, %v280
    %vm282 = vweird.f32 %v190
    %vm283 = vweird.f32 %v276
    %vm284 = vmor %vm282, %vm283
    %v285 = vsel %vm284, %v276, %v281
    %v286 = vrsqrt.pop %v191
    %v287 = vmul.f32 %v286, %v191
    %v288 = vmul.f32 %v287, %v286
    %v289 = vmul.f32 0.5, %v288
    %v290 = vsub.f32 1.5, %v289
    %v291 = vmul.f32 %v286, %v290
    %vm292 = vweird.f32 %v191
    %vm293 = vweird.f32 %v286
    %vm294 = vmor %vm292, %vm293
    %v295 = vsel %vm294, %v286, %v291
    %v296 = vrsqrt.pop %v192
    %v297 = vmul.f32 %v296, %v192
    %v298 = vmul.f32 %v297, %v296
    %v299 = vmul.f32 0.5, %v298
    %v300 = vsub.f32 1.5, %v299
    %v301 = vmul.f32 %v296, %v300
    %vm302 = vweird.f32 %v192
    %vm303 = vweird.f32 %v296
    %vm304 = vmor %vm302, %vm303
    %v305 = vsel %vm304, %v296, %v301
    %v306 = vrsqrt.pop %v193
    %v307 = vmul.f32 %v306, %v193
    %v308 = vmul.f32 %v307, %v306
    %v309 = vmul.f32 0.5, %v308
    %v310 = vsub.f32 1.5, %v309
    %v311 = vmul.f32 %v306, %v310
    %vm312 = vweird.f32 %v193
    %vm313 = vweird.f32 %v306
    %vm314 = vmor %vm312, %vm313
    %v315 = vsel %vm314, %v306, %v311
    %v316 = vrsqrt.pop %v194
    %v317 = vmul.f32 %v316, %v194
    %v318 = vmul.f32 %v317, %v316
    %v319 = vmul.f32 0.5, %v318
    %v320 = vsub.f32 1.5, %v319
    %v321 = vmul.f32 %v316, %v320
    %vm322 = vweird.f32 %v194
    %vm323 = vweird.f32 %v316
    %vm324 = vmor %vm322, %vm323
    %v325 = vsel %vm324, %v316, %v321
    %v326 = vrsqrt.pop %v195
    %v327 = vmul.f32 %v326, %v195
    %v328 = vmul.f32 %v327, %v326
    %v329 = vmul.f32 0.5, %v328
    %v330 = vsub.f32 1.5, %v329
    %v331 = vmul.f32 %v326, %v330
    %vm332 = vweird.f32 %v195
    %vm333 = vweird.f32 %v326
    %vm334 = vmor %vm332, %vm333
    %v335 = vsel %vm334, %v326, %v331
    %v336 = vrsqrt.pop %v196
    %v337 = vmul.f32 %v336, %v196
    %v338 = vmul.f32 %v337, %v336
    %v339 = vmul.f32 0.5, %v338
    %v340 = vsub.f32 1.5, %v339
    %v341 = vmul.f32 %v336, %v340
    %vm342 = vweird.f32 %v196
    %vm343 = vweird.f32 %v336
    %vm344 = vmor %vm342, %vm343
    %v345 = vsel %vm344, %v336, %v341
    %v346 = vrsqrt.pop %v197
    %v347 = vmul.f32 %v346, %v197
    %v348 = vmul.f32 %v347, %v346
    %v349 = vmul.f32 0.5, %v348
    %v350 = vsub.f32 1.5, %v349
    %v351 = vmul.f32 %v346, %v350
    %vm352 = vweird.f32 %v197
    %vm353 = vweird.f32 %v346
    %vm354 = vmor %vm352, %vm353
    %v355 = vsel %vm354, %v346, %v351
    %v356 = vrsqrt.pop %v198
    %v357 = vmul.f32 %v356, %v198
    %v358 = vmul.f32 %v357, %v356
    %v359 = vmul.f32 0.5, %v358
    %v360 = vsub.f32 1.5, %v359
    %v361 = vmul.f32 %v356, %v360
    %vm362 = vweird.f32 %v198
    %vm363 = vweird.f32 %v356
    %vm364 = vmor %vm362, %vm363
    %v365 = vsel %vm364, %v356, %v361
    %v366 = vrsqrt.pop %v199
    %v367 = vmul.f32 %v366, %v199
    %v368 = vmul.f32 %v367, %v366
    %v369 = vmul.f32 0.5, %v368
    %v370 = vsub.f32 1.5, %v369
    %v371 = vmul.f32 %v366, %v370
    %vm372 = vweird.f32 %v199
    %vm373 = vweird.f32 %v366
    %vm374 = vmor %vm372, %vm373
    %v375 = vsel %vm374, %v366, %v371
    %v376 = vrsqrt.pop %v200
    %v377 = vmul.f32 %v376, %v200
    %v378 = vmul.f32 %v377, %v376
    %v379 = vmul.f32 0.5, %v378
    %v380 = vsub.f32 1.5, %v379
    %v381 = vmul.f32 %v376, %v380
    %vm382 = vweird.f32 %v200
    %vm383 = vweird.f32 %v376
    %vm384 = vmor %vm382, %vm383
    %v385 = vsel %vm384, %v376, %v381
    %v386 = vrsqrt.pop %v201
    %v387 = vmul.f32 %v386, %v201
    %v388 = vmul.f32 %v387, %v386
    %v389 = vmul.f32 0.5, %v388
    %v390 = vsub.f32 1.5, %v389
    %v391 = vmul.f32 %v386, %v390
    %vm392 = vweird.f32 %v201
    %vm393 = vweird.f32 %v386
    %vm394 = vmor %vm392, %vm393
    %v395 = vsel %vm394, %v386, %v391
    %v396 = vrsqrt.pop %v202
    %v397 = vmul.f32 %v396, %v202
    %v398 = vmul.f32 %v397, %v396
    %v399 = vmul.f32 0.5, %v398
    %v400 = vsub.f32 1.5, %v399
    %v401 = vmul.f32 %v396, %v400
    %vm402 = vweird.f32 %v202
    %vm403 = vweird.f32 %v396
    %vm404 = vmor %vm402, %vm403
    %v405 = vsel %vm404, %v396, %v401
    %v406 = vrsqrt.pop %v203
    %v407 = vmul.f32 %v406, %v203
    %v408 = vmul.f32 %v407, %v406
    %v409 = vmul.f32 0.5, %v408
    %v410 = vsub.f32 1.5, %v409
    %v411 = vmul.f32 %v406, %v410
    %vm412 = vweird.f32 %v203
    %vm413 = vweird.f32 %v406
    %vm414 = vmor %vm412, %vm413
    %v415 = vsel %vm414, %v406, %v411
    %v416 = vrsqrt.pop %v204
    %v417 = vmul.f32 %v416, %v204
    %v418 = vmul.f32 %v417, %v416
    %v419 = vmul.f32 0.5, %v418
    %v420 = vsub.f32 1.5, %v419
    %v421 = vmul.f32 %v416, %v420
    %vm422 = vweird.f32 %v204
    %vm423 = vweird.f32 %v416
    %vm424 = vmor %vm422, %vm423
    %v425 = vsel %vm424, %v416, %v421
    %v426 = vrsqrt.pop %v205
    %v427 = vmul.f32 %v426, %v205
    %v428 = vmul.f32 %v427, %v426
    %v429 = vmul.f32 0.5, %v428
    %v430 = vsub.f32 1.5, %v429
    %v431 = vmul.f32 %v426, %v430
    %vm432 = vweird.f32 %v205
    %vm433 = vweird.f32 %v426
    %vm434 = vmor %vm432, %vm433
    %v435 = vsel %vm434, %v426, %v431
    %v436 = vrsqrt.pop %v206
    %v437 = vmul.f32 %v436, %v206
    %v438 = vmul.f32 %v437, %v436
    %v439 = vmul.f32 0.5, %v438
    %v440 = vsub.f32 1.5, %v439
    %v441 = vmul.f32 %v436, %v440
    %vm442 = vweird.f32 %v206
    %vm443 = vweird.f32 %v436
    %vm444 = vmor %vm442, %vm443
    %v445 = vsel %vm444, %v436, %v441
    %v446 = vrsqrt.pop %v207
    %v447 = vmul.f32 %v446, %v207
    %v448 = vmul.f32 %v447, %v446
    %v449 = vmul.f32 0.5, %v448
    %v450 = vsub.f32 1.5, %v449
    %v451 = vmul.f32 %v446, %v450
    %vm452 = vweird.f32 %v207
    %vm453 = vweird.f32 %v446
    %vm454 = vmor %vm452, %vm453
    %v455 = vsel %vm454, %v446, %v451
    %v456 = vrsqrt.pop %v208
    %v457 = vmul.f32 %v456, %v208
    %v458 = vmul.f32 %v457, %v456
    %v459 = vmul.f32 0.5, %v458
    %v460 = vsub.f32 1.5, %v459
    %v461 = vmul.f32 %v456, %v460
    %vm462 = vweird.f32 %v208
    %vm463 = vweird.f32 %v456
    %vm464 = vmor %vm462, %vm463
    %v465 = vsel %vm464, %v456, %v461
    %v466 = vrsqrt.pop %v209
    %v467 = vmul.f32 %v466, %v209
    %v468 = vmul.f32 %v467, %v466
    %v469 = vmul.f32 0.5, %v468
    %v470 = vsub.f32 1.5, %v469
    %v471 = vmul.f32 %v466, %v470
    %vm472 = vweird.f32 %v209
    %vm473 = vweird.f32 %v466
    %vm474 = vmor %vm472, %vm473
    %v475 = vsel %vm474, %v466, %v471
    %v476 = vrsqrt.pop %v210
    %v477 = vmul.f32 %v476, %v210
    %v478 = vmul.f32 %v477, %v476
    %v479 = vmul.f32 0.5, %v478
    %v480 = vsub.f32 1.5, %v479
    %v481 = vmul.f32 %v476, %v480
    %vm482 = vweird.f32 %v210
    %vm483 = vweird.f32 %v476
    %vm484 = vmor %vm482, %vm483
    %v485 = vsel %vm484, %v476, %v481
    %v486 = vrsqrt.pop %v211
    %v487 = vmul.f32 %v486, %v211
    %v488 = vmul.f32 %v487, %v486
    %v489 = vmul.f32 0.5, %v488
    %v490 = vsub.f32 1.5, %v489
    %v491 = vmul.f32 %v486, %v490
    %vm492 = vweird.f32 %v211
    %vm493 = vweird.f32 %v486
    %vm494 = vmor %vm492, %vm493
    %v495 = vsel %vm494, %v486, %v491
    %v496 = vrsqrt.pop %v212
    %v497 = vmul.f32 %v496, %v212
    %v498 = vmul.f32 %v497, %v496
    %v499 = vmul.f32 0.5, %v498
    %v500 = vsub.f32 1.5, %v499
    %v501 = vmul.f32 %v496, %v500
    %vm502 = vweird.f32 %v212
    %vm503 = vweird.f32 %v496
    %vm504 = vmor %vm502, %vm503
    %v505 = vsel %vm504, %v496, %v501
    %v506 = vrsqrt.pop %v213
    %v507 = vmul.f32 %v506, %v213
    %v508 = vmul.f32 %v507, %v506
    %v509 = vmul.f32 0.5, %v508
    %v510 = vsub.f32 1.5, %v509
    %v511 = vmul.f32 %v506, %v510
    %vm512 = vweird.f32 %v213
    %vm513 = vweird.f32 %v506
    %vm514 = vmor %vm512, %vm513
    %v515 = vsel %vm514, %v506, %v511
    %v516 = vrsqrt.pop %v214
    %v517 = vmul.f32 %v516, %v214
    %v518 = vmul.f32 %v517, %v516
    %v519 = vmul.f32 0.5, %v518
    %v520 = vsub.f32 1.5, %v519
    %v521 = vmul.f32 %v516, %v520
    %vm522 = vweird.f32 %v214
    %vm523 = vweird.f32 %v516
    %vm524 = vmor %vm522, %vm523
    %v525 = vsel %vm524, %v516, %v521
    %v526 = vrsqrt.pop %v215
    %v527 = vmul.f32 %v526, %v215
    %v528 = vmul.f32 %v527, %v526
    %v529 = vmul.f32 0.5, %v528
    %v530 = vsub.f32 1.5, %v529
    %v531 = vmul.f32 %v526, %v530
    %vm532 = vweird.f32 %v215
    %vm533 = vweird.f32 %v526
    %vm534 = vmor %vm532, %vm533
    %v535 = vsel %vm534, %v526, %v531
    %v536 = vmul.f32 %v56, %v225
    %v537 = vmul.f32 %v57, %v235
    %v538 = vmul.f32 %v58, %v245
    %v539 = vmul.f32 %v59, %v255
    %v540 = vmul.f32 %v60, %v265
    %v541 = vmul.f32 %v61, %v275
    %v542 = vmul.f32 %v62, %v285
    %v543 = vmul.f32 %v63, %v295
    %v544 = vmul.f32 %v64, %v305
    %v545 = vmul.f32 %v65, %v315
    %v546 = vmul.f32 %v66, %v325
    %v547 = vmul.f32 %v67, %v335
    %v548 = vmul.f32 %v68, %v345
    %v549 = vmul.f32 %v69, %v355
    %v550 = vmul.f32 %v70, %v365
    %v551 = vmul.f32 %v71, %v375
    %v552 = vmul.f32 %v72, %v385
    %v553 = vmul.f32 %v73, %v395
    %v554 = vmul.f32 %v74, %v405
    %v555 = vmul.f32 %v75, %v415
    %v556 = vmul.f32 %v76, %v425
    %v557 = vmul.f32 %v77, %v435
    %v558 = vmul.f32 %v78, %v445
    %v559 = vmul.f32 %v79, %v455
    %v560 = vmul.f32 %v80, %v465
    %v561 = vmul.f32 %v81, %v475
    %v562 = vmul.f32 %v82, %v485
    %v563 = vmul.f32 %v83, %v495
    %v564 = vmul.f32 %v84, %v505
    %v565 = vmul.f32 %v85, %v515
    %v566 = vmul.f32 %v86, %v525
    %v567 = vmul.f32 %v87, %v535
    %v568 = vpack.c.bf16 %v537, %v536
    %v569 = vpack.c.bf16 %v539, %v538
    %v570 = vpack.c.bf16 %v541, %v540
    %v571 = vpack.c.bf16 %v543, %v542
    %v572 = vpack.c.bf16 %v545, %v544
    %v573 = vpack.c.bf16 %v547, %v546
    %v574 = vpack.c.bf16 %v549, %v548
    %v575 = vpack.c.bf16 %v551, %v550
    %v576 = vpack.c.bf16 %v553, %v552
    %v577 = vpack.c.bf16 %v555, %v554
    %v578 = vpack.c.bf16 %v557, %v556
    %v579 = vpack.c.bf16 %v559, %v558
    %v580 = vpack.c.bf16 %v561, %v560
    %v581 = vpack.c.bf16 %v563, %v562
    %v582 = vpack.c.bf16 %v565, %v564
    %v583 = vpack.c.bf16 %v567, %v566
    %v584 = vld [vmem:[#allocation2] sm:$0xf]
    %585 = vmatpush.bf16.xpose.msra.mxu0 %v575
    %586 = vmatpush.bf16.xpose.msra.mxu0 %v574
    %587 = vmatpush.bf16.xpose.msra.mxu0 %v573
    %588 = vmatpush.bf16.xpose.msra.mxu0 %v572
    %589 = vmatpush.bf16.xpose.msra.mxu0 %v571
    %590 = vmatpush.bf16.xpose.msra.mxu0 %v570
    %591 = vmatpush.bf16.xpose.msra.mxu0 %v569
    %592 = vmatpush.bf16.xpose.msra.mxu0 %v568
    %593 = vmatmul.bf16.gmra.mxu0 %v584
    %v594 = vpop.f32.mrf.mxu0
    %v595 = vadd.f32 0.0, %v594
    %v596 = vpop.f32.mrf.mxu0
    %597 = vdwg.mxu0
    %598 = vmatpush.bf16.xpose.msra.mxu0 %v583
    %599 = vmatpush.bf16.xpose.msra.mxu0 %v582
    %600 = vmatpush.bf16.xpose.msra.mxu0 %v581
    %601 = vmatpush.bf16.xpose.msra.mxu0 %v580
    %602 = vmatpush.bf16.xpose.msra.mxu0 %v579
    %603 = vmatpush.bf16.xpose.msra.mxu0 %v578
    %604 = vmatpush.bf16.xpose.msra.mxu0 %v577
    %605 = vmatpush.bf16.xpose.msra.mxu0 %v576
    %606 = vmatmul.bf16.gmra.mxu0 %v584
    %v607 = vpop.f32.mrf.mxu0
    %v608 = vadd.f32 0.0, %v607
    %v609 = vpop.f32.mrf.mxu0
    %610 = vdwg.mxu0
    %v611 = vmul.f32 %v595, 30.0
    %v612 = vmul.f32 %v608, 30.0
    %v613 = vld [vmem:[%s1] sm:$0xff]
    %v614 = vlaneseq
    %v615 = vand.u32 %v614, 127
    %v616 = vadd.s32 %v615, 128
    %s617 = smul.u32 0, 256
    %v618 = vstv %s617
    %v619 = vadd.s32 %v615, %v618
    %v620 = vadd.s32 %v616, %v618
    %621 = vset.pattern.permute.xlu0 0
    %622 = vperm.xlu0 %621, %v613
    %v623 = vpop.permute.xlu0 %622
    %vm624 = vcmp.eq.s32.totalorder %v619, %v623
    %vm625 = vcmp.eq.s32.totalorder %v620, %v623
    %v626 = vsub.f32 %v611, 9.0
    %v627 = vsub.f32 %v612, 9.0
    %v628 = vsel %vm624, %v626, %v611
    %v629 = vsel %vm625, %v627, %v612
    %vm630 = vcmp.lt.s32.totalorder %v619, 16
    %vm631 = vcmp.lt.s32.totalorder %v620, 16
    %v632 = vsel %vm630, %v628, -1e+30
    %v633 = vsel %vm631, %v629, -1e+30
    %v634 = vld [vmem:[#allocation3] sm:$0xff]
    %v635 = vmax.f32 %v632, %v633
    %636 = vmax.xlane.f32.xlu0 %v635
    %v637 = vpop.xlane.xlu0 %636
    %v638 = vmax.f32 %v634, %v637
    %v639 = vld [vmem:[#allocation4] sm:$0xff]
    %v640 = vsub.f32 %v634, %v638
    %v641 = vmul.f32 %v640, 1.442695
    %v642 = vpow.pop %v641
    %v643 = vmul.f32 %v639, %v642
    %645 = vset.pattern.permute.xlu0 0
    %646 = vperm.xlu0 %645, %v638
    %v647 = vpop.permute.xlu0 %646
    %v649 = vsub.f32 %v632, %v647
    %v650 = vsub.f32 %v633, %v647
    %v651 = vmul.f32 %v649, 1.442695
    %v652 = vpow.pop %v651
    %v653 = vmul.f32 %v650, 1.442695
    %v654 = vpow.pop %v653
    %v655 = vadd.f32 %v652, %v654
    %656 = vadd.xlane.f32.xlu0 %v655
    %v657 = vpop.xlane.xlu0 %656
    %v658 = vadd.f32 %v643, %v657
    %vm659 = vcmask 7168
    %660 = vst.msk [vmem:[#allocation4] sm:$0xff] %vm659, %v658
    %661 = vst.msk [vmem:[#allocation3] sm:$0xff] %vm659, %v638
    %v662 = vld [vmem:[#allocation5] sm:$0xff]
    %v663 = vsel %vm624, %v632, 0.0
    %v664 = vsel %vm625, %v633, 0.0
    %v665 = vadd.f32 %v663, %v664
    %666 = vadd.xlane.f32.xlu0 %v665
    %v667 = vpop.xlane.xlu0 %666
    %v668 = vadd.f32 %v662, %v667
    %669 = vst.msk [vmem:[#allocation5] sm:$0xff] %vm659, %v668
    // Predicated region
    $region22: #{tpu_custom_call.1} parent=1 // pred_check
      %p670 = pneg %p30
    $region23: #{tpu_custom_call.1} parent=1 // pred_check_branch
      %672 = sbr.rel (%p670) target = $region25
    $region24: #{tpu_custom_call.1} parent=1 // pred_region
      %v673 = vld [vmem:[#allocation3] sm:$0xff]
      %v674 = vld [vmem:[#allocation4] sm:$0xff]
      %v675 = vlog2.pop %v674
      %v676 = vmul.f32 %v675, 0.6931472
      %v677 = vadd.f32 %v673, %v676
      %v678 = vld [vmem:[#allocation5] sm:$0xff]
      %v679 = vsub.f32 %v677, %v678
      %v680 = vlaneseq
      %v681 = vshrl.u32 %v680, 7
      %s682 = smul.u32 0, 8
      %v683 = vstv %s682
      %v684 = vadd.s32 %v681, %v683
      %vm685 = vcmp.lt.s32.totalorder %v684, 8
      %v686 = vsel %vm685, %v679, 0.0
      %687 = vst.msk [vmem:[%s3] sm:$0xff] %vm659, %v686
    $region25: #{tpu_custom_call.1} parent=1 // pred_fallthru
      _
    // Predicated region
    $region26: #{tpu_custom_call.1} parent=1 // pred_check
      _
    $region27: #{tpu_custom_call.1} parent=1 // pred_check_branch
      %689 = sbr.rel (0) target = $region29
    $region28: #{tpu_custom_call.1} parent=1 // pred_region
      _
    $region29: #{tpu_custom_call.1} parent=1 // pred_fallthru
      _
    // Predicated region
    $region30: #{tpu_custom_call.1} parent=1 // pred_check
      _
    $region31: #{tpu_custom_call.1} parent=1 // pred_check_branch
      %691 = sbr.rel (0) target = $region33
    $region32: #{tpu_custom_call.1} parent=1 // pred_region
      _
    $region33: #{tpu_custom_call.1} parent=1 // pred_fallthru
      _
    %692 = vsyncpa [#allocation7], 1

</llo_original>
